<compile_context>
chip_gen: v5e
topology: v5e:2x2
jax: 0.10.0
libtpu: 0.0.40
codegen_flags: <defaults>
</compile_context>

<pallas_src>
import math
import jax
import jax.numpy as jnp
from jax.experimental import pallas as pl
from jax.experimental.pallas import tpu as pltpu


def _lora_kernel(scale_ref, x_ref, a_ref, b_ref, o_ref, xa_ref):
    # Compute the (tm, rank) low-rank projection once per row block (first
    # column step) and keep it in VMEM scratch for all column tiles.
    @pl.when(pl.program_id(1) == 0)
    def _():
        xa = jnp.dot(x_ref[...], a_ref[...], preferred_element_type=jnp.float32)
        # Fold the scalar into the tiny (tm, rank) intermediate (output_dim/rank
        # fewer VPU multiplies than scaling the wide result), then drop back to
        # the input dtype so the second matmul keeps the fast MXU path when the
        # input is bf16.  For f32 inputs the cast is a no-op.
        xa_ref[...] = (xa * scale_ref[0, 0]).astype(xa_ref.dtype)

    # (tm, rank) @ (rank, tn) -> (tm, tn); f32 accumulation on the MXU.
    o_ref[...] = jnp.dot(xa_ref[...], b_ref[...],
                         preferred_element_type=jnp.float32).astype(o_ref.dtype)


def _vmem_capacity_bytes():
    """Per-TensorCore VMEM capacity; conservative v7x fallback if unavailable."""
    try:
        cap = int(pltpu.get_tpu_info().vmem_capacity_bytes)
        return min(max(cap, 16 << 20), 128 << 20)
    except Exception:
        return 64 << 20  # v7x has the smallest VMEM (64 MiB / TC)


def lora_forward(x, A, B, scaling, *, tm=None, tn=None):
    """x: (..., input_dim).  Returns (..., output_dim) = ((x @ A) @ B) * scaling."""
    input_dim, rank = A.shape
    rank_b, output_dim = B.shape
    assert rank_b == rank and x.shape[-1] == input_dim

    # Keep all MXU operands in one dtype: mixed dtypes silently promote both
    # dots to the slow f32 multi-pass MXU path.
    if A.dtype != x.dtype:
        A = A.astype(x.dtype)
    if B.dtype != x.dtype:
        B = B.astype(x.dtype)

    lead_shape = x.shape[:-1]
    rows = int(math.prod(lead_shape)) if lead_shape else 1
    x2 = x.reshape(rows, input_dim)

    # ---- Output-width strategy ---------------------------------------------
    if output_dim % 128 == 0:
        n_kern, pad_out = output_dim, False
    elif output_dim >= 256:
        # Wide output just short of a 128 multiple: write the true width (block
        # == full dim) and accept one masked vst on the final partial vreg,
        # instead of an extra XLA un-pad pass over the whole output tensor.
        n_kern, pad_out = output_dim, False
    else:
        # Narrow output: lane-density matters more than the (tiny) un-pad
        # slice, so pad B's columns up to 128.
        n_kern, pad_out = 128 * ((output_dim + 127) // 128), True
        B = jnp.pad(B, ((0, 0), (0, n_kern - output_dim)))

    x_isz = x.dtype.itemsize
    o_isz = x_isz
    # Sublane packing: f32 -> 8 rows, bf16 -> 16, int8/fp8 -> 32.
    sublane = {4: 8, 2: 16, 1: 32}.get(x_isz, 8)

    # ---- Column tile --------------------------------------------------------
    if tn is None:
        # Lane-dense tiles of up to 1024 columns keep the per-row VMEM cost low
        # so tm can stay at/above the ~512-row HBM-roofline knee for large dims.
        tn = n_kern if (n_kern % 128 != 0) else min(n_kern, 1024)
    else:
        tn = min(int(tn), n_kern)
    n_steps = pl.cdiv(n_kern, tn)

    # ---- Row tile from the VMEM budget --------------------------------------
    vmem_cap = _vmem_capacity_bytes()
    ab_bytes = A.size * A.dtype.itemsize + B.size * B.dtype.itemsize
    # Per row of tile: double-buffered x + out tiles, the f32 (tm, tn) result
    # slab and the tiny (tm, rank) scratch.
    per_row = (2 * input_dim * x_isz
               + 2 * tn * o_isz
               + tn * 4
               + rank * max(x_isz, 4))
    # ~0.68 of capacity for tiles; A/B counted once (resident, tiny for LoRA).
    tile_budget = max(int(0.68 * vmem_cap) - ab_bytes, 2 << 20)
    tm_cap = 2048 if x_isz <= 2 else 1024
    if tm is None:
        tm = int(min(tile_budget // per_row, tm_cap))
    rows_al = sublane * ((rows + sublane - 1) // sublane)
    tm = max(sublane, min((int(tm) // sublane) * sublane, rows_al))
    # v7x megacore: the "parallel" row axis only helps if it has >= 2 steps.
    if rows > sublane and pl.cdiv(rows, tm) < 2:
        tm = sublane * pl.cdiv(pl.cdiv(rows, 2), sublane)

    grid = (pl.cdiv(rows, tm), n_steps)  # column axis innermost

    vmem_need = tm * per_row + 2 * ab_bytes + (6 << 20)
    vmem_limit = int(min(max(vmem_need, 32 << 20),
                         max(vmem_cap - (4 << 20), 32 << 20)))

    scale = jnp.asarray(scaling, jnp.float32).reshape(1, 1)

    cost = pl.CostEstimate(
        flops=2 * rows * rank * (input_dim + n_kern),
        transcendentals=0,
        bytes_accessed=(rows * input_dim * x_isz
                        + rows * n_kern * o_isz
                        + ab_bytes),
    )

    out = pl.pallas_call(
        _lora_kernel,
        out_shape=jax.ShapeDtypeStruct((rows, n_kern), x.dtype),
        grid_spec=pltpu.PrefetchScalarGridSpec(
            num_scalar_prefetch=0,
            grid=grid,
            in_specs=[
                # scaling scalar lives in SMEM, same block every step
                pl.BlockSpec((1, 1), lambda i, j: (0, 0),
                             memory_space=pltpu.SMEM),
                # large row tile of x; index independent of j -> DMA'd once
                pl.BlockSpec((tm, input_dim), lambda i, j: (i, 0)),
                # full A resident across all steps
                pl.BlockSpec((input_dim, rank), lambda i, j: (0, 0)),
                # column tile of B
                pl.BlockSpec((rank, tn), lambda i, j: (0, j)),
            ],
            out_specs=pl.BlockSpec((tm, tn), lambda i, j: (i, j)),
            scratch_shapes=[pltpu.VMEM((tm, rank), x.dtype)],
        ),
        compiler_params=pltpu.CompilerParams(
            dimension_semantics=("parallel", "arbitrary"),
            vmem_limit_bytes=vmem_limit),
        cost_estimate=cost,
    )(scale, x2, A, B)

    if pad_out:
        out = out[:, :output_dim]
    return out.reshape(*lead_shape, output_dim)


if __name__ == "__main__":
    input_dim, output_dim, rank = 32, 32, 4
    batch, seq = 2, 8

    key = jax.random.PRNGKey(0)
    kx, ka, kb = jax.random.split(key, 3)

    # Deterministic "parameters" (PyTorch init used randn; we mirror with normals).
    x = jax.random.normal(kx, (batch, seq, input_dim), dtype=jnp.float32)
    A = jax.random.normal(ka, (input_dim, rank), dtype=jnp.float32)
    B = jax.random.normal(kb, (rank, output_dim), dtype=jnp.float32)
    scaling = jnp.float32(1.0)

    out = lora_forward(x, A, B, scaling)
    out = jax.block_until_ready(out)

    # Pure-JAX reference check.
    ref = (x @ A) @ B * scaling
    assert out.shape == (batch, seq, output_dim)
    assert jnp.allclose(out, ref, atol=1e-4, rtol=1e-4)

    print("KERNEL_OK")
</pallas_src>

<mosaic_0001>
module attributes {stable_mosaic.version = 11 : i64} {
  func.func @_lora_kernel(%arg0: i32, %arg1: i32, %arg2: memref<1x1xf32, #tpu.memory_space<smem>>, %arg3: memref<8x32xf32, #tpu.memory_space<vmem>>, %arg4: memref<32x4xf32, #tpu.memory_space<vmem>>, %arg5: memref<4x128xf32, #tpu.memory_space<vmem>>, %arg6: memref<8x128xf32, #tpu.memory_space<vmem>>, %arg7: memref<8x4xf32, #tpu.memory_space<vmem>>) attributes {dimension_semantics = [#tpu.dimension_semantics<parallel>, #tpu.dimension_semantics<arbitrary>], iteration_bounds = array<i64: 2, 1>, scalar_prefetch = 0 : i64, scratch_operands = 1 : i64, tpu.core_type = #tpu.core_type<tc>, window_params = [{transform_indices = @transform_0, window_bounds = array<i64: 1, 1>}, {transform_indices = @transform_1, window_bounds = array<i64: 8, 32>}, {pipeline_mode = #tpu.pipeline_mode<synchronous>, transform_indices = @transform_2, window_bounds = array<i64: 32, 4>}, {transform_indices = @transform_3, window_bounds = array<i64: 4, 128>}, {transform_indices = @transform_4, window_bounds = array<i64: 8, 128>}]} {
    %c0_i32 = arith.constant 0 : i32
    %0 = arith.cmpi eq, %arg1, %c0_i32 : i32
    %1 = arith.extui %0 : i1 to i32
    %c0_i32_0 = arith.constant 0 : i32
    %2 = arith.cmpi ne, %1, %c0_i32_0 : i32
    scf.if %2 {
      %c0_6 = arith.constant 0 : index
      %c0_7 = arith.constant 0 : index
      %7 = vector.load %arg3[%c0_6, %c0_7] : memref<8x32xf32, #tpu.memory_space<vmem>>, vector<8x32xf32>
      %c0_8 = arith.constant 0 : index
      %c0_9 = arith.constant 0 : index
      %8 = vector.load %arg4[%c0_8, %c0_9] : memref<32x4xf32, #tpu.memory_space<vmem>>, vector<32x4xf32>
      %cst_10 = arith.constant dense<0.000000e+00> : vector<8x4xf32>
      %9 = tpu.matmul %7, %8, %cst_10 {dimension_numbers = #tpu.dot_dimension_numbers<[1], [0], [0], [1], [0, 0, 1, 1], [], []>} : vector<8x32xf32>, vector<32x4xf32>, vector<8x4xf32> -> vector<8x4xf32>
      %c0_11 = arith.constant 0 : index
      %c0_12 = arith.constant 0 : index
      %10 = memref.load %arg2[%c0_11, %c0_12] : memref<1x1xf32, #tpu.memory_space<smem>>
      %11 = vector.broadcast %10 : f32 to vector<8x4xf32>
      %12 = arith.mulf %9, %11 : vector<8x4xf32>
      %c0_13 = arith.constant 0 : index
      %c0_14 = arith.constant 0 : index
      %13 = vector.load %arg7[%c0_13, %c0_14] : memref<8x4xf32, #tpu.memory_space<vmem>>, vector<8x4xf32>
      tpu.vector_store %arg7[%c0_13, %c0_14], %12 {strides = array<i32>} : memref<8x4xf32, #tpu.memory_space<vmem>>, vector<8x4xf32>,
    } else {
    }
    %c0 = arith.constant 0 : index
    %c0_1 = arith.constant 0 : index
    %3 = vector.load %arg7[%c0, %c0_1] : memref<8x4xf32, #tpu.memory_space<vmem>>, vector<8x4xf32>
    %c0_2 = arith.constant 0 : index
    %c0_3 = arith.constant 0 : index
    %4 = vector.load %arg5[%c0_2, %c0_3] : memref<4x128xf32, #tpu.memory_space<vmem>>, vector<4x128xf32>
    %cst = arith.constant dense<0.000000e+00> : vector<8x128xf32>
    %5 = tpu.matmul %3, %4, %cst {dimension_numbers = #tpu.dot_dimension_numbers<[1], [0], [0], [1], [0, 0, 1, 1], [], []>} : vector<8x4xf32>, vector<4x128xf32>, vector<8x128xf32> -> vector<8x128xf32>
    %c0_4 = arith.constant 0 : index
    %c0_5 = arith.constant 0 : index
    %6 = vector.load %arg6[%c0_4, %c0_5] : memref<8x128xf32, #tpu.memory_space<vmem>>, vector<8x128xf32>
    tpu.vector_store %arg6[%c0_4, %c0_5], %5 {strides = array<i32>} : memref<8x128xf32, #tpu.memory_space<vmem>>, vector<8x128xf32>,
    return
  }
  func.func @transform_0(%arg0: i32, %arg1: i32) -> (i32, i32) {
    %c0_i32 = arith.constant 0 : i32
    %c0_i32_0 = arith.constant 0 : i32
    %c0_i32_1 = arith.constant 0 : i32
    return %c0_i32, %c0_i32_0 : i32, i32
  }
  func.func @transform_1(%arg0: i32, %arg1: i32) -> (i32, i32) {
    %c0_i32 = arith.constant 0 : i32
    %c0_i32_0 = arith.constant 0 : i32
    return %arg0, %c0_i32 : i32, i32
  }
  func.func @transform_2(%arg0: i32, %arg1: i32) -> (i32, i32) {
    %c0_i32 = arith.constant 0 : i32
    %c0_i32_0 = arith.constant 0 : i32
    %c0_i32_1 = arith.constant 0 : i32
    return %c0_i32, %c0_i32_0 : i32, i32
  }
  func.func @transform_3(%arg0: i32, %arg1: i32) -> (i32, i32) {
    %c0_i32 = arith.constant 0 : i32
    %c0_i32_0 = arith.constant 0 : i32
    return %c0_i32, %arg1 : i32, i32
  }
  func.func @transform_4(%arg0: i32, %arg1: i32) -> (i32, i32) {
    %c0_i32 = arith.constant 0 : i32
    return %arg0, %arg1 : i32, i32
  }
}

</mosaic_0001>

<llo_original>
// kernel: tpu_custom_call.1
$region0: #{tpu_custom_call.1}
  #allocation0 [shape = 'u32[]', space=smem, size = 0x4, offset = 0x4, fixed_abs, tag = 'smem constant byte address 0x4 - core index']
  #allocation1 [shape = 'u32[72,128]{1,0:T(1,128)}', space=vmem, size = 0x9000, scoped, tag = 'internal scratch']
  #allocation2 [shape = 'f32[8,4]{1,0:T(8,128)}', space=vmem, size = 0x1000, scoped, tag = 'scratch operand']
  #allocation3 [shape = 'f32[1,1]{1,0:T(1,128)S(6)}', space=smem, size = 0x200, scoped, tag = 'scoped memory for tpu_custom_call.1']
  %s0 = inlined_call_operand.<no memory space> [shape: f32[1,1], index: 0, kind: input, shape index: {}]
  %s1 = inlined_call_operand.vmem [shape: f32[16,32], index: 1, kind: input, shape index: {}]
  %s2 = inlined_call_operand.vmem [shape: f32[32,4], index: 2, kind: input, shape index: {}]
  %s3 = inlined_call_operand.vmem [shape: f32[4,128], index: 3, kind: input, shape index: {}]
  %s4 = inlined_call_operand.hbm [shape: f32[16,128], index: 4, kind: output, shape index: {}]
  %s5 = sld [smem:[#allocation0]]
  $region53: #{tpu_custom_call.1} parent=0
    _
  %s7 = ssub.s32 1, %s5
  %s8 = scalar_select 0, %s7, %s5
  %9 = sst [smem:[#allocation3]] %s0
  $region1: #{tpu_custom_call.1} parent=0
    #allocation4 [shape = 'u8[8192]{0}', space=vmem, size = 0x2000, scoped, tag = 'output window, operand 0']
    #allocation5 [shape = 's32[2]{0}', space=sflag, size = 0x8, scoped, tag = 'scoped memory for tpu_custom_call.1']
    %10 = vsyncpa [#allocation5], 0
    %s11 = scalar_lea.sflag [#allocation5], 1
    %12 = vsyncpa %s11, 0
    loop: start=0, step=1, limit=4
    $region2: #{tpu_custom_call.1} parent=1 // loop_pre_header
      _
    $region3: #{tpu_custom_call.1} parent=1 // loop_header
      %s14 = sphi 0, %s18
      %p15 = scmp.ge.s32.totalorder %s14, 4
      %s21 = sphi 0, %s33
      %s22 = sphi 0, %s29
      %s23 = sphi 0, %s21
      %s24 = sphi 0, %s22
      %s25 = sphi 0, %s23
      %s26 = sphi 0, %s24
      %s34 = sphi 0, %s34
      %s36 = sphi 0, %s34
      %s37 = sphi 0, %s36
      %s51 = sphi 0, %s37
      %s57 = sphi 0, %s59
      %s60 = sphi 0, %s57
      %s61 = sphi 0, %s60
      %s77 = sphi 0, %s61
      %s81 = sphi 0, %s81
      %s83 = sphi 0, %s81
      %s84 = sphi 0, %s83
      %s98 = sphi 0, %s84
      %s104 = sphi 0, %s106
      %s107 = sphi 0, %s104
      %s108 = sphi 0, %s107
      %s124 = sphi 0, %s108
      %s132 = sphi 0, %s134
      %s135 = sphi 0, %s132
      %s136 = sphi 0, %s135
      %s152 = sphi 0, %s136
    $region4: #{tpu_custom_call.1} parent=1 // loop_header_branch
      %17 = sbr.rel (%p15) target = $region8
    $region5: #{tpu_custom_call.1} parent=1 // loop_body
      %s19 = ssub.s32 %s14, 1
      %s20 = ssub.s32 %s14, 2
      %s27 = sadd.s32 1, %s22
      %p28 = scmp.ge.s32.totalorder %s27, 1
      %s29 = scalar_select %p28, 0, %s27
      %s30 = sadd.s32 1, %s21
      %s31 = scalar_select %p28, %s30, %s21
      %p32 = scmp.ge.s32.totalorder %s31, 2
      %s33 = scalar_select %p32, 0, %s31
      %s35 = sadd.s32 %s34, 1
      %p38 = scmp.eq.s32.totalorder %s14, 1
      %p39 = scmp.ne.s32.totalorder %s34, %s36
      %p40 = scmp.eq.s32.totalorder %s14, 0
      %p41 = por %p39, %p40
      %p42 = scmp.ne.s32.totalorder %s34, %s36
      %p43 = scmp.eq.s32.totalorder %s19, 1
      %p44 = por %p42, %p43
      %p45 = scmp.ne.s32.totalorder %s36, %s37
      %p46 = scmp.eq.s32.totalorder %s19, 0
      %p47 = por %p45, %p46
      %p48 = scmp.ne.s32.totalorder %s36, %s37
      %p49 = scmp.eq.s32.totalorder %s20, 1
      %p50 = por %p48, %p49
      %p52 = scmp.ne.s32.totalorder %s37, %s51
      %p53 = scmp.eq.s32.totalorder %s20, 0
      %p54 = por %p52, %p53
      %s55 = ssub.s32 %s21, %s33
      %p56 = scmp.eq.s32.totalorder %s55, 0
      %s58 = sadd.s32 %s57, 1
      %s59 = scalar_select %p56, %s57, %s58
      %p62 = pneg %p56
      %p63 = scmp.eq.s32.totalorder %s14, 1
      %p64 = por %p62, %p63
      %p65 = scmp.ne.s32.totalorder %s57, %s60
      %p66 = scmp.eq.s32.totalorder %s14, 0
      %p67 = por %p65, %p66
      %p68 = scmp.ne.s32.totalorder %s57, %s60
      %p69 = scmp.eq.s32.totalorder %s19, 1
      %p70 = por %p68, %p69
      %p71 = scmp.ne.s32.totalorder %s60, %s61
      %p72 = scmp.eq.s32.totalorder %s19, 0
      %p73 = por %p71, %p72
      %p74 = scmp.ne.s32.totalorder %s60, %s61
      %p75 = scmp.eq.s32.totalorder %s20, 1
      %p76 = por %p74, %p75
      %p78 = scmp.ne.s32.totalorder %s61, %s77
      %p79 = scmp.eq.s32.totalorder %s20, 0
      %p80 = por %p78, %p79
      %s82 = sadd.s32 %s81, 1
      %p85 = scmp.eq.s32.totalorder %s14, 1
      %p86 = scmp.ne.s32.totalorder %s81, %s83
      %p87 = scmp.eq.s32.totalorder %s14, 0
      %p88 = por %p86, %p87
      %p89 = scmp.ne.s32.totalorder %s81, %s83
      %p90 = scmp.eq.s32.totalorder %s19, 1
      %p91 = por %p89, %p90
      %p92 = scmp.ne.s32.totalorder %s83, %s84
      %p93 = scmp.eq.s32.totalorder %s19, 0
      %p94 = por %p92, %p93
      %p95 = scmp.ne.s32.totalorder %s83, %s84
      %p96 = scmp.eq.s32.totalorder %s20, 1
      %p97 = por %p95, %p96
      %p99 = scmp.ne.s32.totalorder %s84, %s98
      %p100 = scmp.eq.s32.totalorder %s20, 0
      %p101 = por %p99, %p100
      %s102 = ssub.s32 %s22, %s29
      %p103 = scmp.eq.s32.totalorder %s102, 0
      %s105 = sadd.s32 %s104, 1
      %s106 = scalar_select %p103, %s104, %s105
      %p109 = pneg %p103
      %p110 = scmp.eq.s32.totalorder %s14, 1
      %p111 = por %p109, %p110
      %p112 = scmp.ne.s32.totalorder %s104, %s107
      %p113 = scmp.eq.s32.totalorder %s14, 0
      %p114 = por %p112, %p113
      %p115 = scmp.ne.s32.totalorder %s104, %s107
      %p116 = scmp.eq.s32.totalorder %s19, 1
      %p117 = por %p115, %p116
      %p118 = scmp.ne.s32.totalorder %s107, %s108
      %p119 = scmp.eq.s32.totalorder %s19, 0
      %p120 = por %p118, %p119
      %p121 = scmp.ne.s32.totalorder %s107, %s108
      %p122 = scmp.eq.s32.totalorder %s20, 1
      %p123 = por %p121, %p122
      %p125 = scmp.ne.s32.totalorder %s108, %s124
      %p126 = scmp.eq.s32.totalorder %s20, 0
      %p127 = por %p125, %p126
      %s128 = ssub.s32 %s21, %s33
      %s129 = ssub.s32 %s22, %s29
      %s130 = sor.u32 %s128, %s129
      %p131 = scmp.eq.s32.totalorder %s130, 0
      %s133 = sadd.s32 %s132, 1
      %s134 = scalar_select %p131, %s132, %s133
      %p137 = pneg %p131
      %p138 = scmp.eq.s32.totalorder %s14, 1
      %p139 = por %p137, %p138
      %p140 = scmp.ne.s32.totalorder %s132, %s135
      %p141 = scmp.eq.s32.totalorder %s14, 0
      %p142 = por %p140, %p141
      %p143 = scmp.ne.s32.totalorder %s132, %s135
      %p144 = scmp.eq.s32.totalorder %s19, 1
      %p145 = por %p143, %p144
      %p146 = scmp.ne.s32.totalorder %s135, %s136
      %p147 = scmp.eq.s32.totalorder %s19, 0
      %p148 = por %p146, %p147
      %p149 = scmp.ne.s32.totalorder %s135, %s136
      %p150 = scmp.eq.s32.totalorder %s20, 1
      %p151 = por %p149, %p150
      %p153 = scmp.ne.s32.totalorder %s136, %s152
      %p154 = scmp.eq.s32.totalorder %s20, 0
      %p155 = por %p153, %p154
      %p156 = scmp.le.s32.totalorder 1, %s14
      %p157 = scmp.lt.s32.totalorder %s14, 3
      %p158 = pnand %p156, %p157
      %p159 = pneg %p158
      // Predicated region
      $region9: #{tpu_custom_call.1} parent=5 // pred_check
        _
      $region10: #{tpu_custom_call.1} parent=5 // pred_check_branch
        %161 = sbr.rel (%p158) target = $region12
      $region11: #{tpu_custom_call.1} parent=5 // pred_region
        %s162 = ssub.s32 %s14, 1
        // Predicated region
        $region13: #{tpu_custom_call.1} parent=11 // pred_check
          %p163 = pneg %p47
        $region14: #{tpu_custom_call.1} parent=11 // pred_check_branch
          %165 = sbr.rel (%p163) target = $region16
        $region15: #{tpu_custom_call.1} parent=11 // pred_region
          _
        $region16: #{tpu_custom_call.1} parent=11 // pred_fallthru
          _
        // Predicated region
        $region17: #{tpu_custom_call.1} parent=11 // pred_check
          %p166 = pneg %p94
        $region18: #{tpu_custom_call.1} parent=11 // pred_check_branch
          %168 = sbr.rel (%p166) target = $region20
        $region19: #{tpu_custom_call.1} parent=11 // pred_region
          _
        $region20: #{tpu_custom_call.1} parent=11 // pred_fallthru
          _
        // Predicated region
        $region21: #{tpu_custom_call.1} parent=11 // pred_check
          %p169 = pneg %p120
        $region22: #{tpu_custom_call.1} parent=11 // pred_check_branch
          %171 = sbr.rel (%p169) target = $region24
        $region23: #{tpu_custom_call.1} parent=11 // pred_region
          %p172 = scmp.lt.s32.totalorder %s24, 0
          %s173 = scalar_select %p172, %s24, 0
          %s174 = smul.addr %s173, 4
          %s175 = scalar_lea.vmem %s3, %s174
        $region24: #{tpu_custom_call.1} parent=11 // pred_fallthru
          _
      $region12: #{tpu_custom_call.1} parent=5 // pred_fallthru
        _
      %p176 = scmp.lt.s32.totalorder %s14, 2
      // Predicated region
      $region25: #{tpu_custom_call.1} parent=5 // pred_check
        %p177 = pneg %p176
      $region26: #{tpu_custom_call.1} parent=5 // pred_check_branch
        %179 = sbr.rel (%p177) target = $region28
      $region27: #{tpu_custom_call.1} parent=5 // pred_region
        // Predicated region
        $region29: #{tpu_custom_call.1} parent=27 // pred_check
          %p180 = pneg %p67
        $region30: #{tpu_custom_call.1} parent=27 // pred_check_branch
          %182 = sbr.rel (%p180) target = $region32
        $region31: #{tpu_custom_call.1} parent=27 // pred_region
          %p183 = scmp.lt.s32.totalorder %s21, 1
          %s184 = scalar_select %p183, %s21, 1
          %s185 = smul.addr %s184, 8
          %s186 = scalar_lea.vmem %s1, %s185
        $region32: #{tpu_custom_call.1} parent=27 // pred_fallthru
          _
      $region28: #{tpu_custom_call.1} parent=5 // pred_fallthru
        _
      %p187 = scmp.le.s32.totalorder 1, %s14
      %p188 = scmp.lt.s32.totalorder %s14, 3
      %p189 = pnand %p187, %p188
      %p190 = pneg %p189
      // Predicated region
      $region33: #{tpu_custom_call.1} parent=5 // pred_check
        _
      $region34: #{tpu_custom_call.1} parent=5 // pred_check_branch
        %192 = sbr.rel (%p189) target = $region36
      $region35: #{tpu_custom_call.1} parent=5 // pred_region
        %s193 = ssub.s32 %s14, 1
        %p194 = pneg %p47
        %p195 = pneg %p44
        %p196 = scmp.lt.s32.totalorder %s23, 1
        %s197 = scalar_select %p196, %s23, 1
        %s198 = smul.addr %s197, 8
        %s199 = scalar_lea.vmem %s1, %s198
        %p200 = pneg %p73
        %p201 = pneg %p70
        %p202 = pneg %p94
        %p203 = pneg %p91
        %p204 = scmp.lt.s32.totalorder %s24, 0
        %s205 = scalar_select %p204, %s24, 0
        %s206 = smul.addr %s205, 4
        %s207 = scalar_lea.vmem %s3, %s206
        %p208 = pneg %p120
        %p209 = pneg %p117
        %p210 = pneg %p148
        %p211 = pneg %p145
        %s212 = sand.u32 %s135, 1
        %s213 = scalar_lea.sflag [#allocation5], %s212
        %s214 = sand.u32 %s135, 1
        %s215 = smul.addr %s214, 8
        %s216 = scalar_lea.vmem [#allocation4], %s215
        %p217 = scmp.lt.s32.totalorder %s23, 1
        %s218 = scalar_select %p217, %s23, 1
        %s219 = smul.addr %s218, 8
        %s220 = scalar_lea.vmem %s1, %s219
        %p221 = scmp.lt.s32.totalorder %s24, 0
        %s222 = scalar_select %p221, %s24, 0
        %s223 = smul.addr %s222, 4
        %s224 = scalar_lea.vmem %s3, %s223
        %p225 = scmp.eq.s32.totalorder %s24, 0
        // Predicated region
        $region37: #{tpu_custom_call.1} parent=35 // pred_check
          %p226 = pneg %p225
        $region38: #{tpu_custom_call.1} parent=35 // pred_check_branch
          %228 = sbr.rel (%p226) target = $region40
        $region39: #{tpu_custom_call.1} parent=35 // pred_region
          %v229 = vld [vmem:[%s220] sm:$0xff]
          %v230 = vld [vmem:[%s2] sm:$0xff]
          %v231 = vld [vmem:[%s2 + $0x8] sm:$0xff]
          %v232 = vld [vmem:[%s2 + $0x10] sm:$0xff]
          %v233 = vld [vmem:[%s2 + $0x18] sm:$0xff]
          %vm234 = vcmask 261120
          %v236 = vsel %vm234, %v229, 0
          %238 = vmatpush.msra.mxu0 0.0
          %239 = vmatpush.msra.mxu0 0.0
          %240 = vmatpush.msra.mxu0 0.0
          %241 = vmatpush.msra.mxu0 0.0
          %242 = vmatpush.msra.mxu0 0.0
          %243 = vmatpush.msra.mxu0 0.0
          %244 = vmatpush.msra.mxu0 0.0
          %245 = vmatpush.msra.mxu0 0.0
          %246 = vmatpush.msra.mxu0 0.0
          %247 = vmatpush.msra.mxu0 0.0
          %248 = vmatpush.msra.mxu0 0.0
          %249 = vmatpush.msra.mxu0 0.0
          %250 = vmatpush.msra.mxu0 %v233
          %251 = vmatpush.msra.mxu0 %v232
          %252 = vmatpush.msra.mxu0 %v231
          %253 = vmatpush.msra.mxu0 %v230
          %254 = vmatmul.f32.gmra.mxu0 %v236
          %v255 = vpop.f32.mrf.mxu0
          %v256 = vadd.f32 0.0, %v255
          %257 = vdwg.mxu0
          %s258 = sld [smem:[#allocation3]]
          %v259 = vstv %s258
          %v260 = vmul.f32 %v256, %v259
          %vm261 = vcmask 31744
          %262 = vst.msk [vmem:[#allocation2] sm:$0xff] %vm261, %v260
        $region40: #{tpu_custom_call.1} parent=35 // pred_fallthru
          _
        %v263 = vld [vmem:[#allocation2] sm:$0xff]
        %v264 = vld [vmem:[%s224] sm:$0xf]
        %vm265 = vcmask 31744
        %v267 = vsel %vm265, %v263, 0
        %vm269 = vcmask 1043456
        %v271 = vsel %vm269, %v264, 0
        %273 = vmatpush.msra.mxu0 0.0
        %274 = vmatpush.msra.mxu0 0.0
        %275 = vmatpush.msra.mxu0 0.0
        %276 = vmatpush.msra.mxu0 0.0
        %277 = vmatpush.msra.mxu0 0.0
        %278 = vmatpush.msra.mxu0 0.0
        %279 = vmatpush.msra.mxu0 0.0
        %280 = vmatpush.msra.mxu0 0.0
        %281 = vmatpush.msra.mxu0 0.0
        %282 = vmatpush.msra.mxu0 0.0
        %283 = vmatpush.msra.mxu0 0.0
        %284 = vmatpush.msra.mxu0 0.0
        %285 = vmatpush.msra.mxu0 0.0
        %286 = vmatpush.msra.mxu0 0.0
        %287 = vmatpush.msra.mxu0 0.0
        %288 = vmatpush.msra.mxu0 %v271
        %289 = vmatmul.f32.gmra.mxu0 %v267
        %v290 = vpop.f32.mrf.mxu0
        %v291 = vadd.f32 0.0, %v290
        %292 = vdwg.mxu0
        %293 = vst [vmem:[%s216] sm:$0xff] %v291
        %s294 = sand.u32 %s135, 1
        %s295 = scalar_lea.sflag [#allocation5], %s294
        %s296 = sand.u32 %s135, 1
        %s297 = smul.addr %s296, 8
        %s298 = scalar_lea.vmem [#allocation4], %s297
        // Predicated region
        $region41: #{tpu_custom_call.1} parent=35 // pred_check
          %p299 = pneg %p145
        $region42: #{tpu_custom_call.1} parent=35 // pred_check_branch
          %301 = sbr.rel (%p299) target = $region44
        $region43: #{tpu_custom_call.1} parent=35 // pred_region
          %303 = vsyncadd %s295, 0
          %s304 = sadd.s32 %s24, %s23
          %s305 = smul.addr %s304, 8
          %s306 = scalar_lea.hbm %s4, %s305
          %s308 = sshll.u32 %s298, 4
          %s309 = int_to_ptr.vmem [resolvable:$true] %s308
          %s310 = sshll.u32 %s306, 4
          %s311 = int_to_ptr.hbm [resolvable:$true] %s310
          %313 = dma.vmem_to_hbm [thread:$0]  %s309, 128, %s311, %s295
        $region44: #{tpu_custom_call.1} parent=35 // pred_fallthru
          _
      $region36: #{tpu_custom_call.1} parent=5 // pred_fallthru
        _
      %p314 = scmp.le.s32.totalorder 2, %s14
      // Predicated region
      $region45: #{tpu_custom_call.1} parent=5 // pred_check
        %p315 = pneg %p314
      $region46: #{tpu_custom_call.1} parent=5 // pred_check_branch
        %317 = sbr.rel (%p315) target = $region48
      $region47: #{tpu_custom_call.1} parent=5 // pred_region
        %s318 = ssub.s32 %s14, 2
        // Predicated region
        $region49: #{tpu_custom_call.1} parent=47 // pred_check
          %p319 = pneg %p151
        $region50: #{tpu_custom_call.1} parent=47 // pred_check_branch
          %321 = sbr.rel (%p319) target = $region52
        $region51: #{tpu_custom_call.1} parent=47 // pred_region
          %s322 = sand.u32 %s136, 1
          %s323 = scalar_lea.sflag [#allocation5], %s322
          %s324 = sand.u32 %s136, 1
          %s325 = smul.addr %s324, 8
          %s326 = scalar_lea.vmem [#allocation4], %s325
          %328 = dma.done %s323, 128
        $region52: #{tpu_custom_call.1} parent=47 // pred_fallthru
          _
      $region48: #{tpu_custom_call.1} parent=5 // pred_fallthru
        _
    $region6: #{tpu_custom_call.1} parent=1 // loop_footer
      %s18 = sadd.s32 1, %s14
    $region7: #{tpu_custom_call.1} parent=1 // loop_footer_branch
      %13 = sbr.rel target = $region3
    $region8: #{tpu_custom_call.1} parent=1 // loop_exit
      _
    %329 = vsyncpa [#allocation5], 1
    %s330 = scalar_lea.sflag [#allocation5], 1
    %331 = vsyncpa %s330, 1

</llo_original>
